<compile_context>
chip_gen: v6e
topology: v6e:2x2x1
jax: 0.10.0
libtpu: 0.0.40
codegen_flags: <defaults>
</compile_context>

<pallas_src>
import functools

import jax
import jax.numpy as jnp
from jax import lax
from jax.experimental import pallas as pl
from jax.experimental.pallas import tpu as pltpu


def _entropy_kernel(x_ref, o_ref, *, hw, t_hw, has_tail):
    """x_ref: (1, C, t_hw) tile; o_ref: (1, 1, 8, 128) per-block partial."""
    j = pl.program_id(1)

    x = x_ref[...].astype(jnp.float32)              # (1, C, t_hw)
    m = jnp.max(x, axis=1, keepdims=True)           # (1, 1, t_hw)
    s = x - m
    e = jnp.exp(s)
    z = jnp.sum(e, axis=1, keepdims=True)           # (1, 1, t_hw)
    es = jnp.sum(e * s, axis=1, keepdims=True)      # (1, 1, t_hw)
    # sum_c p * log p (per spatial column) == es/z - log(z), since sum_c p == 1.
    h = es / z - jnp.log(z)                         # (1, 1, t_hw)

    sub = lax.broadcasted_iota(jnp.int32, o_ref.shape, 2)
    lane = lax.broadcasted_iota(jnp.int32, o_ref.shape, 3)

    def write(total):
        o_ref[...] = jnp.where((sub == 0) & (lane == 0), total, 0.0)

    if has_tail:
        # Mask only the (single) partial last block; steady-state blocks skip it.
        last = pl.num_programs(1) - 1

        @pl.when(j != last)
        def _():
            write(jnp.sum(h))

        @pl.when(j == last)
        def _():
            col = lax.broadcasted_iota(jnp.int32, h.shape, 2) + j * t_hw
            write(jnp.sum(jnp.where(col < hw, h, 0.0)))
    else:
        write(jnp.sum(h))


def entropy_loss(x_nchw):
    """x_nchw: (B, C, H, W). Returns scalar float32 entropy loss (matches PyTorch)."""
    B, C, H, W = x_nchw.shape
    HW = H * W
    # Free reshape (merges trailing contiguous dims); no transpose / extra HBM pass.
    x3 = x_nchw.reshape(B, C, HW)

    itemsize = x3.dtype.itemsize
    # Sublane packing: f32 -> 8 rows/vreg, bf16 -> 16.  VMEM footprint of a
    # (1, C, t_hw) tile is c_pad * t_hw * itemsize, not C * t_hw * itemsize.
    sublane = 8 * max(1, 4 // itemsize)
    c_pad = pl.cdiv(C, sublane) * sublane

    # Per-input-buffer budget (Pallas double-buffers it), derived from the chip
    # when available; 8 MiB everywhere in practice (v7x 64 MiB / v5e-v6e 128 MiB).
    try:
        vmem_cap = pltpu.get_tpu_info().vmem_capacity_bytes
    except Exception:
        vmem_cap = 64 * 1024 * 1024
    budget_bytes = min(8 << 20, max(2 << 20, vmem_cap // 8))

    hw_full = pl.cdiv(HW, 128) * 128
    t_hw = max(128, (budget_bytes // (c_pad * itemsize)) // 128 * 128)
    t_hw = min(t_hw, hw_full, 65536)
    n_j = pl.cdiv(HW, t_hw)
    has_tail = (HW % t_hw) != 0
    # TODO(synk): for very large C (where even t_hw=128 overflows the VMEM cap),
    # add a C-chunked online-softmax grid axis instead of a single-C-block tile.

    # Explicit VMEM request: double-buffered input + tiny outputs + headroom.
    in_bytes = 2 * c_pad * t_hw * itemsize
    vmem_limit = int(min(48 << 20, max(in_bytes + (8 << 20), 24 << 20)))

    kernel = functools.partial(_entropy_kernel, hw=HW, t_hw=t_hw, has_tail=has_tail)

    cost = pl.CostEstimate(
        flops=6 * B * C * HW,
        transcendentals=B * C * HW + B * HW,
        bytes_accessed=B * C * HW * itemsize + B * n_j * 8 * 128 * 4,
    )

    partials = pl.pallas_call(
        kernel,
        out_shape=jax.ShapeDtypeStruct((B, n_j, 8, 128), jnp.float32),
        grid_spec=pltpu.PrefetchScalarGridSpec(
            num_scalar_prefetch=0,
            grid=(B, n_j),
            in_specs=[pl.BlockSpec((1, C, t_hw), lambda b, j: (b, 0, j))],
            out_specs=pl.BlockSpec((1, 1, 8, 128), lambda b, j: (b, j, 0, 0)),
        ),
        compiler_params=pltpu.CompilerParams(
            dimension_semantics=("parallel", "parallel"),
            vmem_limit_bytes=vmem_limit,
        ),
        cost_estimate=cost,
    )(x3)

    return -jnp.sum(partials)


def _reference(x_nchw):
    p = jax.nn.softmax(x_nchw, axis=1)
    logp = jax.nn.log_softmax(x_nchw, axis=1)
    return -jnp.sum(p * logp)


if __name__ == "__main__":
    key = jax.random.PRNGKey(0)
    x = jax.random.normal(key, (2, 4, 16, 16), dtype=jnp.float32)

    loss = jax.block_until_ready(entropy_loss(x))
    ref = jax.block_until_ready(_reference(x))

    assert jnp.allclose(loss, ref, rtol=1e-5, atol=1e-4), (loss, ref)
    print("KERNEL_OK")
</pallas_src>

<mosaic_0001>
module attributes {stable_mosaic.version = 11 : i64} {
  func.func @_entropy_kernel(%arg0: i32, %arg1: i32, %arg2: memref<1x4x256xf32, #tpu.memory_space<vmem>>, %arg3: memref<1x1x8x128xf32, #tpu.memory_space<vmem>>) attributes {dimension_semantics = [#tpu.dimension_semantics<parallel>, #tpu.dimension_semantics<parallel>], iteration_bounds = array<i64: 2, 1>, scalar_prefetch = 0 : i64, scratch_operands = 0 : i64, tpu.core_type = #tpu.core_type<tc>, window_params = [{transform_indices = @transform_0, window_bounds = array<i64: 1, 4, 256>}, {transform_indices = @transform_1, window_bounds = array<i64: 1, 1, 8, 128>}]} {
    %c0 = arith.constant 0 : index
    %c0_0 = arith.constant 0 : index
    %c0_1 = arith.constant 0 : index
    %0 = vector.load %arg2[%c0, %c0_0, %c0_1] : memref<1x4x256xf32, #tpu.memory_space<vmem>>, vector<1x4x256xf32>
    %cst = arith.constant dense<0xFF800000> : vector<1x256xf32>
    %1 = vector.multi_reduction <maximumf>, %0, %cst [1] : vector<1x4x256xf32> to vector<1x256xf32>
    %2 = vector.shape_cast %1 : vector<1x256xf32> to vector<1x1x256xf32>
    %3 = vector.broadcast %2 : vector<1x1x256xf32> to vector<1x4x256xf32>
    %4 = arith.subf %0, %3 : vector<1x4x256xf32>
    %5 = math.exp %4 : vector<1x4x256xf32>
    %cst_2 = arith.constant dense<0.000000e+00> : vector<1x256xf32>
    %6 = vector.multi_reduction <add>, %5, %cst_2 [1] : vector<1x4x256xf32> to vector<1x256xf32>
    %7 = vector.shape_cast %6 : vector<1x256xf32> to vector<1x1x256xf32>
    %8 = arith.mulf %5, %4 : vector<1x4x256xf32>
    %cst_3 = arith.constant dense<0.000000e+00> : vector<1x256xf32>
    %9 = vector.multi_reduction <add>, %8, %cst_3 [1] : vector<1x4x256xf32> to vector<1x256xf32>
    %10 = vector.shape_cast %9 : vector<1x256xf32> to vector<1x1x256xf32>
    %11 = arith.divf %10, %7 : vector<1x1x256xf32>
    %12 = math.log %7 : vector<1x1x256xf32>
    %13 = arith.subf %11, %12 : vector<1x1x256xf32>
    %14 = tpu.iota {dimensions = array<i32: 2>} : vector<1x1x8x128xi32>
    %15 = tpu.iota {dimensions = array<i32: 3>} : vector<1x1x8x128xi32>
    %16 = vector.shape_cast %13 : vector<1x1x256xf32> to vector<1x1x1x256xf32>
    %cst_4 = arith.constant dense<0.000000e+00> : vector<1xf32>
    %17 = vector.multi_reduction <add>, %16, %cst_4 [1, 2, 3] : vector<1x1x1x256xf32> to vector<1xf32>
    %18 = vector.shape_cast %17 : vector<1xf32> to vector<1x1x1x1xf32>
    %19 = vector.extract %18[0, 0, 0, 0] : f32 from vector<1x1x1x1xf32>
    %c0_i32 = arith.constant 0 : i32
    %20 = vector.broadcast %c0_i32 : i32 to vector<1x1x8x128xi32>
    %21 = arith.cmpi eq, %14, %20 : vector<1x1x8x128xi32>
    %c0_i32_5 = arith.constant 0 : i32
    %22 = vector.broadcast %c0_i32_5 : i32 to vector<1x1x8x128xi32>
    %23 = arith.cmpi eq, %15, %22 : vector<1x1x8x128xi32>
    %24 = arith.andi %21, %23 : vector<1x1x8x128xi1>
    %cst_6 = arith.constant 0.000000e+00 : f32
    %25 = vector.broadcast %19 : f32 to vector<1x1x8x128xf32>
    %26 = vector.broadcast %cst_6 : f32 to vector<1x1x8x128xf32>
    %27 = arith.select %24, %25, %26 : vector<1x1x8x128xi1>, vector<1x1x8x128xf32>
    %c0_7 = arith.constant 0 : index
    %c0_8 = arith.constant 0 : index
    %c0_9 = arith.constant 0 : index
    %c0_10 = arith.constant 0 : index
    %28 = vector.load %arg3[%c0_7, %c0_8, %c0_9, %c0_10] : memref<1x1x8x128xf32, #tpu.memory_space<vmem>>, vector<1x1x8x128xf32>
    tpu.vector_store %arg3[%c0_7, %c0_8, %c0_9, %c0_10], %27 {strides = array<i32>} : memref<1x1x8x128xf32, #tpu.memory_space<vmem>>, vector<1x1x8x128xf32>,
    return
  }
  func.func @transform_0(%arg0: i32, %arg1: i32) -> (i32, i32, i32) {
    %c0_i32 = arith.constant 0 : i32
    %c0_i32_0 = arith.constant 0 : i32
    return %arg0, %c0_i32, %arg1 : i32, i32, i32
  }
  func.func @transform_1(%arg0: i32, %arg1: i32) -> (i32, i32, i32, i32) {
    %c0_i32 = arith.constant 0 : i32
    %c0_i32_0 = arith.constant 0 : i32
    %c0_i32_1 = arith.constant 0 : i32
    return %arg0, %arg1, %c0_i32, %c0_i32_0 : i32, i32, i32, i32
  }
}

</mosaic_0001>

<llo_original>
// kernel: tpu_custom_call.1
$region0: #{tpu_custom_call.1}
  #allocation0 [shape = 'u32[]', space=smem, size = 0x4, offset = 0x4, fixed_abs, tag = 'smem constant byte address 0x4 - core index']
  #allocation1 [shape = 'u32[144,128]{1,0:T(1,128)}', space=vmem, size = 0x12000, scoped, tag = 'internal scratch']
  %s0 = inlined_call_operand.hbm [shape: f32[2,4,256], index: 0, kind: input, shape index: {}]
  %s1 = inlined_call_operand.hbm [shape: f32[2,1,8,128], index: 1, kind: output, shape index: {}]
  %s2 = sld [smem:[#allocation0]]
  $region41: #{tpu_custom_call.1} parent=0
    _
  %s4 = ssub.s32 1, %s2
  %s5 = scalar_select 0, %s4, %s2
  $region1: #{tpu_custom_call.1} parent=0
    #allocation2 [shape = 'u8[8192]{0}', space=vmem, size = 0x2000, scoped, tag = 'input window, operand 0']
    #allocation3 [shape = 's32[2]{0}', space=sflag, size = 0x8, scoped, tag = 'scoped memory for tpu_custom_call.1']
    #allocation4 [shape = 's32[2]{0}', space=sflag, size = 0x8, scoped, tag = 'scoped memory for tpu_custom_call.1']
    #allocation5 [shape = 'u8[8192]{0}', space=vmem, size = 0x2000, scoped, tag = 'output window, operand 0']
    %6 = vsyncpa [#allocation3], 0
    %s7 = scalar_lea.sflag [#allocation3], 1
    %8 = vsyncpa %s7, 0
    %9 = vsyncpa [#allocation4], 0
    %s10 = scalar_lea.sflag [#allocation4], 1
    %11 = vsyncpa %s10, 0
    loop: start=0, step=1, limit=4
    $region2: #{tpu_custom_call.1} parent=1 // loop_pre_header
      _
    $region3: #{tpu_custom_call.1} parent=1 // loop_header
      %s13 = sphi 0, %s17
      %p14 = scmp.ge.s32.totalorder %s13, 4
      %s20 = sphi 0, %s32
      %s21 = sphi 0, %s28
      %s22 = sphi 0, %s20
      %s23 = sphi 0, %s21
      %s24 = sphi 0, %s22
      %s25 = sphi 0, %s23
      %s37 = sphi 0, %s39
      %s40 = sphi 0, %s37
      %s41 = sphi 0, %s40
      %s57 = sphi 0, %s41
      %s65 = sphi 0, %s67
      %s68 = sphi 0, %s65
      %s69 = sphi 0, %s68
      %s85 = sphi 0, %s69
    $region4: #{tpu_custom_call.1} parent=1 // loop_header_branch
      %16 = sbr.rel (%p14) target = $region8
    $region5: #{tpu_custom_call.1} parent=1 // loop_body
      %s18 = ssub.s32 %s13, 1
      %s19 = ssub.s32 %s13, 2
      %s26 = sadd.s32 1, %s21
      %p27 = scmp.ge.s32.totalorder %s26, 1
      %s28 = scalar_select %p27, 0, %s26
      %s29 = sadd.s32 1, %s20
      %s30 = scalar_select %p27, %s29, %s20
      %p31 = scmp.ge.s32.totalorder %s30, 2
      %s32 = scalar_select %p31, 0, %s30
      %s33 = ssub.s32 %s20, %s32
      %s34 = ssub.s32 %s21, %s28
      %s35 = sor.u32 %s33, %s34
      %p36 = scmp.eq.s32.totalorder %s35, 0
      %s38 = sadd.s32 %s37, 1
      %s39 = scalar_select %p36, %s37, %s38
      %p42 = pneg %p36
      %p43 = scmp.eq.s32.totalorder %s13, 1
      %p44 = por %p42, %p43
      %p45 = scmp.ne.s32.totalorder %s37, %s40
      %p46 = scmp.eq.s32.totalorder %s13, 0
      %p47 = por %p45, %p46
      %p48 = scmp.ne.s32.totalorder %s37, %s40
      %p49 = scmp.eq.s32.totalorder %s18, 1
      %p50 = por %p48, %p49
      %p51 = scmp.ne.s32.totalorder %s40, %s41
      %p52 = scmp.eq.s32.totalorder %s18, 0
      %p53 = por %p51, %p52
      %p54 = scmp.ne.s32.totalorder %s40, %s41
      %p55 = scmp.eq.s32.totalorder %s19, 1
      %p56 = por %p54, %p55
      %p58 = scmp.ne.s32.totalorder %s41, %s57
      %p59 = scmp.eq.s32.totalorder %s19, 0
      %p60 = por %p58, %p59
      %s61 = ssub.s32 %s20, %s32
      %s62 = ssub.s32 %s21, %s28
      %s63 = sor.u32 %s61, %s62
      %p64 = scmp.eq.s32.totalorder %s63, 0
      %s66 = sadd.s32 %s65, 1
      %s67 = scalar_select %p64, %s65, %s66
      %p70 = pneg %p64
      %p71 = scmp.eq.s32.totalorder %s13, 1
      %p72 = por %p70, %p71
      %p73 = scmp.ne.s32.totalorder %s65, %s68
      %p74 = scmp.eq.s32.totalorder %s13, 0
      %p75 = por %p73, %p74
      %p76 = scmp.ne.s32.totalorder %s65, %s68
      %p77 = scmp.eq.s32.totalorder %s18, 1
      %p78 = por %p76, %p77
      %p79 = scmp.ne.s32.totalorder %s68, %s69
      %p80 = scmp.eq.s32.totalorder %s18, 0
      %p81 = por %p79, %p80
      %p82 = scmp.ne.s32.totalorder %s68, %s69
      %p83 = scmp.eq.s32.totalorder %s19, 1
      %p84 = por %p82, %p83
      %p86 = scmp.ne.s32.totalorder %s69, %s85
      %p87 = scmp.eq.s32.totalorder %s19, 0
      %p88 = por %p86, %p87
      %p89 = scmp.le.s32.totalorder 1, %s13
      %p90 = scmp.lt.s32.totalorder %s13, 3
      %p91 = pnand %p89, %p90
      %p92 = pneg %p91
      // Predicated region
      $region9: #{tpu_custom_call.1} parent=5 // pred_check
        _
      $region10: #{tpu_custom_call.1} parent=5 // pred_check_branch
        %94 = sbr.rel (%p91) target = $region12
      $region11: #{tpu_custom_call.1} parent=5 // pred_region
        %s95 = ssub.s32 %s13, 1
      $region12: #{tpu_custom_call.1} parent=5 // pred_fallthru
        _
      %p96 = scmp.lt.s32.totalorder %s13, 2
      // Predicated region
      $region13: #{tpu_custom_call.1} parent=5 // pred_check
        %p97 = pneg %p96
      $region14: #{tpu_custom_call.1} parent=5 // pred_check_branch
        %99 = sbr.rel (%p97) target = $region16
      $region15: #{tpu_custom_call.1} parent=5 // pred_region
        // Predicated region
        $region17: #{tpu_custom_call.1} parent=15 // pred_check
          %p100 = pneg %p47
        $region18: #{tpu_custom_call.1} parent=15 // pred_check_branch
          %102 = sbr.rel (%p100) target = $region20
        $region19: #{tpu_custom_call.1} parent=15 // pred_region
          %s103 = sand.u32 %s37, 1
          %s104 = scalar_lea.sflag [#allocation3], %s103
          %s105 = sand.u32 %s37, 1
          %s106 = smul.addr %s105, 8
          %s107 = scalar_lea.vmem [#allocation2], %s106
          %s108 = smul.u32 2, %s21
          %s110 = ssub.s32 128, 128
          %111 = vsyncadd %s104, %s110
          %s112 = smul.addr %s20, 2
          %s113 = sadd.s32 %s108, %s112
          %s114 = smul.addr %s113, 64
          %s115 = scalar_lea.hbm %s0, %s114
          %s117 = sshll.u32 %s107, 4
          %s118 = int_to_ptr.vmem [resolvable:$true] %s117
          %120 = dma.hbm_to_vmem [thread:$0]  %s115, 128, %s118, %s104
        $region20: #{tpu_custom_call.1} parent=15 // pred_fallthru
          _
      $region16: #{tpu_custom_call.1} parent=5 // pred_fallthru
        _
      %p121 = scmp.le.s32.totalorder 1, %s13
      %p122 = scmp.lt.s32.totalorder %s13, 3
      %p123 = pnand %p121, %p122
      %p124 = pneg %p123
      // Predicated region
      $region21: #{tpu_custom_call.1} parent=5 // pred_check
        _
      $region22: #{tpu_custom_call.1} parent=5 // pred_check_branch
        %126 = sbr.rel (%p123) target = $region24
      $region23: #{tpu_custom_call.1} parent=5 // pred_region
        %s127 = ssub.s32 %s13, 1
        %s128 = sand.u32 %s40, 1
        %s129 = scalar_lea.sflag [#allocation3], %s128
        %s130 = sand.u32 %s40, 1
        %s131 = smul.addr %s130, 8
        %s132 = scalar_lea.vmem [#allocation2], %s131
        // Predicated region
        $region25: #{tpu_custom_call.1} parent=23 // pred_check
          %p133 = pneg %p53
        $region26: #{tpu_custom_call.1} parent=23 // pred_check_branch
          %135 = sbr.rel (%p133) target = $region28
        $region27: #{tpu_custom_call.1} parent=23 // pred_region
          %136 = dma.done %s129, 128
        $region28: #{tpu_custom_call.1} parent=23 // pred_fallthru
          _
        %s137 = sand.u32 %s40, 1
        %s138 = scalar_lea.sflag [#allocation3], %s137
        %s139 = sand.u32 %s40, 1
        %s140 = smul.addr %s139, 8
        %s141 = scalar_lea.vmem [#allocation2], %s140
        %p142 = pneg %p53
        %p143 = pneg %p50
        %p144 = pneg %p81
        %p145 = pneg %p78
        %s146 = sand.u32 %s68, 1
        %s147 = scalar_lea.sflag [#allocation4], %s146
        %s148 = sand.u32 %s68, 1
        %s149 = smul.addr %s148, 8
        %s150 = scalar_lea.vmem [#allocation5], %s149
        %s151 = smul.u32 2, %s23
        %v152 = vld [vmem:[%s132] sm:$0xff]
        %v154 = vcombine.high %v152, %v152
        %vm156 = vcmask 1043456
        %v157 = vsel %vm156, %v152, -inf
        %v158 = vrot.slane %v157, 4
        %v159 = vmax.f32 %v157, %v158
        %v160 = vrot.slane %v159, 2
        %v161 = vmax.f32 %v159, %v160
        %v162 = vrot.slane %v161, 1
        %v163 = vmax.f32 %v161, %v162
        %v164 = vsel %vm156, %v154, -inf
        %v165 = vrot.slane %v164, 4
        %v166 = vmax.f32 %v164, %v165
        %v167 = vrot.slane %v166, 2
        %v168 = vmax.f32 %v166, %v167
        %v169 = vrot.slane %v168, 1
        %v170 = vmax.f32 %v168, %v169
        %v173 = vcombine.low %v163, %v170
        %v175 = vsub.f32 %v152, %v173
        %v176 = vmul.f32 %v175, 1.442695
        %v177 = vpow.pop %v176
        %v179 = vcombine.high %v177, %v177
        %v181 = vsel %vm156, %v177, 0.0
        %v182 = vrot.slane %v181, 4
        %v183 = vadd.f32 %v181, %v182
        %v184 = vrot.slane %v183, 2
        %v185 = vadd.f32 %v183, %v184
        %v186 = vrot.slane %v185, 1
        %v187 = vadd.f32 %v185, %v186
        %v188 = vsel %vm156, %v179, 0.0
        %v189 = vrot.slane %v188, 4
        %v190 = vadd.f32 %v188, %v189
        %v191 = vrot.slane %v190, 2
        %v192 = vadd.f32 %v190, %v191
        %v193 = vrot.slane %v192, 1
        %v194 = vadd.f32 %v192, %v193
        %v195 = vmul.f32 %v177, %v175
        %v197 = vcombine.high %v195, %v195
        %v199 = vsel %vm156, %v195, 0.0
        %v200 = vrot.slane %v199, 4
        %v201 = vadd.f32 %v199, %v200
        %v202 = vrot.slane %v201, 2
        %v203 = vadd.f32 %v201, %v202
        %v204 = vrot.slane %v203, 1
        %v205 = vadd.f32 %v203, %v204
        %v206 = vsel %vm156, %v197, 0.0
        %v207 = vrot.slane %v206, 4
        %v208 = vadd.f32 %v206, %v207
        %v209 = vrot.slane %v208, 2
        %v210 = vadd.f32 %v208, %v209
        %v211 = vrot.slane %v210, 1
        %v212 = vadd.f32 %v210, %v211
        %v213 = vrcp.pop %v187
        %v214 = vmul.f32 %v205, %v213
        %v215 = vrcp.pop %v194
        %v216 = vmul.f32 %v212, %v215
        %v217 = vlog2.pop %v187
        %v218 = vmul.f32 %v217, 0.6931472
        %v219 = vlog2.pop %v194
        %v220 = vmul.f32 %v219, 0.6931472
        %v221 = vsub.f32 %v214, %v218
        %v222 = vsub.f32 %v216, %v220
        %v223 = vlaneseq
        %v224 = vshrl.u32 %v223, 7
        %v225 = vlaneseq
        %v226 = vand.u32 %v225, 127
        %vm227 = vcmask 1040384
        %v228 = vsel %vm227, %v221, 0.0
        %v229 = vsel %vm227, %v222, 0.0
        %v230 = vadd.f32 %v228, %v229
        %231 = vadd.xlane.f32.xlu0 %v230
        %v232 = vpop.xlane.xlu0 %231
        %v233 = vrot.slane %v232, 4
        %v234 = vadd.f32 %v232, %v233
        %v235 = vrot.slane %v234, 2
        %v236 = vadd.f32 %v234, %v235
        %v237 = vrot.slane %v236, 1
        %v238 = vadd.f32 %v236, %v237
        %s239 = vtos %v238
        %vm240 = vcmp.eq.s32.totalorder %v224, 0
        %vm241 = vcmp.eq.s32.totalorder %v226, 0
        %vm242 = vmand %vm240, %vm241
        %v243 = vstv %s239
        %v244 = vsel %vm242, %v243, 0.0
        %245 = vst [vmem:[%s150] sm:$0xff] %v244
        %s246 = sand.u32 %s68, 1
        %s247 = scalar_lea.sflag [#allocation4], %s246
        %s248 = sand.u32 %s68, 1
        %s249 = smul.addr %s248, 8
        %s250 = scalar_lea.vmem [#allocation5], %s249
        // Predicated region
        $region29: #{tpu_custom_call.1} parent=23 // pred_check
          %p251 = pneg %p78
        $region30: #{tpu_custom_call.1} parent=23 // pred_check_branch
          %253 = sbr.rel (%p251) target = $region32
        $region31: #{tpu_custom_call.1} parent=23 // pred_region
          %s255 = ssub.s32 128, 128
          %256 = vsyncadd %s247, %s255
          %s257 = sadd.s32 %s23, %s22
          %s258 = smul.addr %s257, 128
          %s259 = scalar_lea.hbm %s1, %s258
          %s261 = sshll.u32 %s250, 4
          %s262 = int_to_ptr.vmem [resolvable:$true] %s261
          %264 = dma.vmem_to_hbm [thread:$0]  %s262, 128, %s259, %s247
        $region32: #{tpu_custom_call.1} parent=23 // pred_fallthru
          _
      $region24: #{tpu_custom_call.1} parent=5 // pred_fallthru
        _
      %p265 = scmp.le.s32.totalorder 2, %s13
      // Predicated region
      $region33: #{tpu_custom_call.1} parent=5 // pred_check
        %p266 = pneg %p265
      $region34: #{tpu_custom_call.1} parent=5 // pred_check_branch
        %268 = sbr.rel (%p266) target = $region36
      $region35: #{tpu_custom_call.1} parent=5 // pred_region
        %s269 = ssub.s32 %s13, 2
        // Predicated region
        $region37: #{tpu_custom_call.1} parent=35 // pred_check
          %p270 = pneg %p84
        $region38: #{tpu_custom_call.1} parent=35 // pred_check_branch
          %272 = sbr.rel (%p270) target = $region40
        $region39: #{tpu_custom_call.1} parent=35 // pred_region
          %s273 = sand.u32 %s69, 1
          %s274 = scalar_lea.sflag [#allocation4], %s273
          %s275 = sand.u32 %s69, 1
          %s276 = smul.addr %s275, 8
          %s277 = scalar_lea.vmem [#allocation5], %s276
          %278 = dma.done %s274, 128
        $region40: #{tpu_custom_call.1} parent=35 // pred_fallthru
          _
      $region36: #{tpu_custom_call.1} parent=5 // pred_fallthru
        _
    $region6: #{tpu_custom_call.1} parent=1 // loop_footer
      %s17 = sadd.s32 1, %s13
    $region7: #{tpu_custom_call.1} parent=1 // loop_footer_branch
      %12 = sbr.rel target = $region3
    $region8: #{tpu_custom_call.1} parent=1 // loop_exit
      _
    %279 = vsyncpa [#allocation3], 1
    %s280 = scalar_lea.sflag [#allocation3], 1
    %281 = vsyncpa %s280, 1
    %282 = vsyncpa [#allocation4], 1
    %s283 = scalar_lea.sflag [#allocation4], 1
    %284 = vsyncpa %s283, 1

</llo_original>
